<compile_context>
chip_gen: v5e
topology: v5e:2x2
jax: 0.10.0
libtpu: 0.0.40
codegen_flags: <defaults>
</compile_context>

<pallas_src>
import functools

import jax
import jax.numpy as jnp
import numpy as np
from jax.experimental import pallas as pl
from jax.experimental.pallas import tpu as pltpu


def actor_kernel(x_ref, w1_ref, b1_ref, w2_ref, b2_ref, w3_ref, b3_ref, mu_ref):
    """Fused 3-layer MLP: tanh hidden activations, linear output (mu)."""
    x = x_ref[...]
    h = jnp.tanh(
        jnp.dot(x, w1_ref[...], preferred_element_type=jnp.float32) + b1_ref[...])
    h = jnp.tanh(
        jnp.dot(h, w2_ref[...], preferred_element_type=jnp.float32) + b2_ref[...])
    mu = jnp.dot(h, w3_ref[...], preferred_element_type=jnp.float32) + b3_ref[...]
    mu_ref[...] = mu.astype(mu_ref.dtype)


def _round_up(n, m):
    return ((n + m - 1) // m) * m


def _choose_bm(batch, block_m, min_steps):
    """Pick the batch-tile height.

    - Whole batch in one tile when it is small (no pipeline overhead).
    - Otherwise big tiles (block_m rows, multiple of 8 sublanes).
    - With min_steps=2 (v7x, 2 TensorCores) make sure the grid has >=2 steps so the
      "parallel" batch axis shards across both cores.
    """
    if batch <= 8 * min_steps:  # too small to be worth splitting
        return batch
    if min_steps > 1:
        bm = min(block_m, _round_up(pl.cdiv(batch, min_steps), 8))
    else:
        bm = block_m
    if bm >= batch:
        return batch
    return bm


def actor_forward(x, params, *, block_m=1024, min_grid_steps=1):
    """x: (B, state_dim) float32.

    Returns (mu, std): mu is (B, action_dim) float32, std is (action_dim,) float32
    (exactly the parameters of the Normal distribution the torch module returns).
    """
    w1, b1, w2, b2, w3, b3, log_std = params
    B, state_dim = x.shape
    h1 = w1.shape[1]
    h2 = w2.shape[1]
    action_dim = w3.shape[1]

    bm = _choose_bm(B, block_m, min_grid_steps)
    grid = (pl.cdiv(B, bm),)

    # Advisory cost hint so XLA can schedule/overlap this small DMA-bound call.
    flops = 2 * B * (state_dim * h1 + h1 * h2 + h2 * action_dim)
    transcendentals = B * (h1 + h2)  # tanh per hidden activation
    weight_bytes = 4 * (state_dim * h1 + h1 + h1 * h2 + h2 + h2 * action_dim + action_dim)
    bytes_accessed = 4 * B * (state_dim + action_dim) + weight_bytes

    def invariant(shape):
        # Grid-invariant block: whole array resident in VMEM, fetched once.
        return pl.BlockSpec(shape, lambda i: tuple(0 for _ in shape))

    mu = pl.pallas_call(
        actor_kernel,
        out_shape=jax.ShapeDtypeStruct((B, action_dim), jnp.float32),
        grid_spec=pltpu.PrefetchScalarGridSpec(
            num_scalar_prefetch=0,
            grid=grid,
            in_specs=[
                pl.BlockSpec((bm, state_dim), lambda i: (i, 0)),  # x batch tile
                invariant((state_dim, h1)),                       # w1
                invariant((1, h1)),                               # b1
                invariant((h1, h2)),                              # w2
                invariant((1, h2)),                               # b2
                invariant((h2, action_dim)),                      # w3
                invariant((1, action_dim)),                       # b3
            ],
            out_specs=pl.BlockSpec((bm, action_dim), lambda i: (i, 0)),
        ),
        compiler_params=pltpu.CompilerParams(
            dimension_semantics=("parallel",)),  # batch axis -> both v7x TCs when >=2 steps
        cost_estimate=pl.CostEstimate(
            flops=flops,
            transcendentals=transcendentals,
            bytes_accessed=bytes_accessed),
    )(x, w1, b1, w2, b2, w3, b3)

    # std is x-independent; return the (action_dim,) vector (Normal broadcasts it),
    # no (B, action_dim) broadcast materialized in HBM.
    std = jnp.exp(log_std)
    return mu, std


def init_params(key, state_dim, hidden_layers, action_dim, action_std=0.0):
    """Deterministic torch.nn.Linear-style init (U(-1/sqrt(fan_in), 1/sqrt(fan_in))).

    Weights stored (in_features, out_features) so the kernel computes x @ W + b,
    which equals torch's x @ W.T + b.
    """
    dims = [state_dim] + list(hidden_layers) + [action_dim]
    params = []
    for fan_in, fan_out in zip(dims[:-1], dims[1:]):
        key, kw, kb = jax.random.split(key, 3)
        bound = 1.0 / np.sqrt(fan_in)
        w = jax.random.uniform(kw, (fan_in, fan_out), jnp.float32, -bound, bound)
        b = jax.random.uniform(kb, (1, fan_out), jnp.float32, -bound, bound)
        params.extend([w, b])
    log_std = jnp.full((action_dim,), -action_std, dtype=jnp.float32)
    params.append(log_std)
    return tuple(params)


def actor_reference(x, params):
    w1, b1, w2, b2, w3, b3, log_std = params
    h = jnp.tanh(x @ w1 + b1)
    h = jnp.tanh(h @ w2 + b2)
    mu = h @ w3 + b3
    std = jnp.exp(log_std)
    return mu, std


if __name__ == "__main__":
    key = jax.random.PRNGKey(0)
    state_dim, hidden_layers, action_dim = 32, [64, 64], 16
    action_std = 0.0

    k_x1, k_x2, k_p = jax.random.split(key, 3)
    params = init_params(k_p, state_dim, hidden_layers, action_dim, action_std)

    fwd = jax.jit(actor_forward, static_argnames=("block_m", "min_grid_steps"))

    # Case 1: small batch -> single whole-batch tile, grid=(1,).
    x_small = jax.random.normal(k_x1, (16, state_dim), dtype=jnp.float32)
    mu, std = fwd(x_small, params)
    jax.block_until_ready((mu, std))
    mu_ref, std_ref = actor_reference(x_small, params)
    assert np.allclose(np.asarray(mu), np.asarray(mu_ref), atol=1e-5, rtol=1e-5)
    assert np.allclose(np.asarray(std), np.asarray(std_ref), atol=1e-6, rtol=1e-6)

    # Case 2: batch not a multiple of the tile, forced small tile + >=2 grid steps
    # (exercises the non-divisible last block masking and the v7x-style split).
    x_large = jax.random.normal(k_x2, (200, state_dim), dtype=jnp.float32)
    mu2, std2 = fwd(x_large, params, block_m=64, min_grid_steps=2)
    jax.block_until_ready((mu2, std2))
    mu2_ref, std2_ref = actor_reference(x_large, params)
    assert np.allclose(np.asarray(mu2), np.asarray(mu2_ref), atol=1e-5, rtol=1e-5)
    assert np.allclose(np.asarray(std2), np.asarray(std2_ref), atol=1e-6, rtol=1e-6)

    # TODO(synk): torch forward returns a torch.distributions.Normal object; we return
    # its (mu, std) parameters, which is the full information content of the forward.
    print("KERNEL_OK")
</pallas_src>

<mosaic_0001>
module attributes {stable_mosaic.version = 11 : i64} {
  func.func @actor_kernel(%arg0: i32, %arg1: memref<16x32xf32, #tpu.memory_space<vmem>>, %arg2: memref<32x64xf32, #tpu.memory_space<vmem>>, %arg3: memref<1x64xf32, #tpu.memory_space<vmem>>, %arg4: memref<64x64xf32, #tpu.memory_space<vmem>>, %arg5: memref<1x64xf32, #tpu.memory_space<vmem>>, %arg6: memref<64x16xf32, #tpu.memory_space<vmem>>, %arg7: memref<1x16xf32, #tpu.memory_space<vmem>>, %arg8: memref<16x16xf32, #tpu.memory_space<vmem>>) attributes {dimension_semantics = [#tpu.dimension_semantics<parallel>], iteration_bounds = array<i64: 1>, scalar_prefetch = 0 : i64, scratch_operands = 0 : i64, tpu.core_type = #tpu.core_type<tc>, window_params = [{transform_indices = @transform_0, window_bounds = array<i64: 16, 32>}, {pipeline_mode = #tpu.pipeline_mode<synchronous>, transform_indices = @transform_1, window_bounds = array<i64: 32, 64>}, {pipeline_mode = #tpu.pipeline_mode<synchronous>, transform_indices = @transform_2, window_bounds = array<i64: 1, 64>}, {pipeline_mode = #tpu.pipeline_mode<synchronous>, transform_indices = @transform_3, window_bounds = array<i64: 64, 64>}, {pipeline_mode = #tpu.pipeline_mode<synchronous>, transform_indices = @transform_4, window_bounds = array<i64: 1, 64>}, {pipeline_mode = #tpu.pipeline_mode<synchronous>, transform_indices = @transform_5, window_bounds = array<i64: 64, 16>}, {pipeline_mode = #tpu.pipeline_mode<synchronous>, transform_indices = @transform_6, window_bounds = array<i64: 1, 16>}, {transform_indices = @transform_7, window_bounds = array<i64: 16, 16>}]} {
    %c0 = arith.constant 0 : index
    %c0_0 = arith.constant 0 : index
    %0 = vector.load %arg1[%c0, %c0_0] : memref<16x32xf32, #tpu.memory_space<vmem>>, vector<16x32xf32>
    %c0_1 = arith.constant 0 : index
    %c0_2 = arith.constant 0 : index
    %1 = vector.load %arg2[%c0_1, %c0_2] : memref<32x64xf32, #tpu.memory_space<vmem>>, vector<32x64xf32>
    %cst = arith.constant dense<0.000000e+00> : vector<16x64xf32>
    %2 = tpu.matmul %0, %1, %cst {dimension_numbers = #tpu.dot_dimension_numbers<[1], [0], [0], [1], [0, 0, 1, 1], [], []>} : vector<16x32xf32>, vector<32x64xf32>, vector<16x64xf32> -> vector<16x64xf32>
    %c0_3 = arith.constant 0 : index
    %c0_4 = arith.constant 0 : index
    %3 = vector.load %arg3[%c0_3, %c0_4] : memref<1x64xf32, #tpu.memory_space<vmem>>, vector<1x64xf32>
    %4 = vector.broadcast %3 : vector<1x64xf32> to vector<16x64xf32>
    %5 = arith.addf %2, %4 : vector<16x64xf32>
    %6 = math.tanh %5 : vector<16x64xf32>
    %c0_5 = arith.constant 0 : index
    %c0_6 = arith.constant 0 : index
    %7 = vector.load %arg4[%c0_5, %c0_6] : memref<64x64xf32, #tpu.memory_space<vmem>>, vector<64x64xf32>
    %cst_7 = arith.constant dense<0.000000e+00> : vector<16x64xf32>
    %8 = tpu.matmul %6, %7, %cst_7 {dimension_numbers = #tpu.dot_dimension_numbers<[1], [0], [0], [1], [0, 0, 1, 1], [], []>} : vector<16x64xf32>, vector<64x64xf32>, vector<16x64xf32> -> vector<16x64xf32>
    %c0_8 = arith.constant 0 : index
    %c0_9 = arith.constant 0 : index
    %9 = vector.load %arg5[%c0_8, %c0_9] : memref<1x64xf32, #tpu.memory_space<vmem>>, vector<1x64xf32>
    %10 = vector.broadcast %9 : vector<1x64xf32> to vector<16x64xf32>
    %11 = arith.addf %8, %10 : vector<16x64xf32>
    %12 = math.tanh %11 : vector<16x64xf32>
    %c0_10 = arith.constant 0 : index
    %c0_11 = arith.constant 0 : index
    %13 = vector.load %arg6[%c0_10, %c0_11] : memref<64x16xf32, #tpu.memory_space<vmem>>, vector<64x16xf32>
    %cst_12 = arith.constant dense<0.000000e+00> : vector<16x16xf32>
    %14 = tpu.matmul %12, %13, %cst_12 {dimension_numbers = #tpu.dot_dimension_numbers<[1], [0], [0], [1], [0, 0, 1, 1], [], []>} : vector<16x64xf32>, vector<64x16xf32>, vector<16x16xf32> -> vector<16x16xf32>
    %c0_13 = arith.constant 0 : index
    %c0_14 = arith.constant 0 : index
    %15 = vector.load %arg7[%c0_13, %c0_14] : memref<1x16xf32, #tpu.memory_space<vmem>>, vector<1x16xf32>
    %16 = vector.broadcast %15 : vector<1x16xf32> to vector<16x16xf32>
    %17 = arith.addf %14, %16 : vector<16x16xf32>
    %c0_15 = arith.constant 0 : index
    %c0_16 = arith.constant 0 : index
    %18 = vector.load %arg8[%c0_15, %c0_16] : memref<16x16xf32, #tpu.memory_space<vmem>>, vector<16x16xf32>
    tpu.vector_store %arg8[%c0_15, %c0_16], %17 {strides = array<i32>} : memref<16x16xf32, #tpu.memory_space<vmem>>, vector<16x16xf32>,
    return
  }
  func.func @transform_0(%arg0: i32) -> (i32, i32) {
    %c0_i32 = arith.constant 0 : i32
    %c0_i32_0 = arith.constant 0 : i32
    return %arg0, %c0_i32 : i32, i32
  }
  func.func @transform_1(%arg0: i32) -> (i32, i32) {
    %c0_i32 = arith.constant 0 : i32
    %c0_i32_0 = arith.constant 0 : i32
    %c0_i32_1 = arith.constant 0 : i32
    return %c0_i32, %c0_i32_0 : i32, i32
  }
  func.func @transform_2(%arg0: i32) -> (i32, i32) {
    %c0_i32 = arith.constant 0 : i32
    %c0_i32_0 = arith.constant 0 : i32
    %c0_i32_1 = arith.constant 0 : i32
    return %c0_i32, %c0_i32_0 : i32, i32
  }
  func.func @transform_3(%arg0: i32) -> (i32, i32) {
    %c0_i32 = arith.constant 0 : i32
    %c0_i32_0 = arith.constant 0 : i32
    %c0_i32_1 = arith.constant 0 : i32
    return %c0_i32, %c0_i32_0 : i32, i32
  }
  func.func @transform_4(%arg0: i32) -> (i32, i32) {
    %c0_i32 = arith.constant 0 : i32
    %c0_i32_0 = arith.constant 0 : i32
    %c0_i32_1 = arith.constant 0 : i32
    return %c0_i32, %c0_i32_0 : i32, i32
  }
  func.func @transform_5(%arg0: i32) -> (i32, i32) {
    %c0_i32 = arith.constant 0 : i32
    %c0_i32_0 = arith.constant 0 : i32
    %c0_i32_1 = arith.constant 0 : i32
    return %c0_i32, %c0_i32_0 : i32, i32
  }
  func.func @transform_6(%arg0: i32) -> (i32, i32) {
    %c0_i32 = arith.constant 0 : i32
    %c0_i32_0 = arith.constant 0 : i32
    %c0_i32_1 = arith.constant 0 : i32
    return %c0_i32, %c0_i32_0 : i32, i32
  }
  func.func @transform_7(%arg0: i32) -> (i32, i32) {
    %c0_i32 = arith.constant 0 : i32
    %c0_i32_0 = arith.constant 0 : i32
    return %arg0, %c0_i32 : i32, i32
  }
}

</mosaic_0001>

<llo_original>
// kernel: actor_forward.1
$region0: #{actor_forward.1}
  #allocation0 [shape = 'u32[]', space=smem, size = 0x4, offset = 0x4, fixed_abs, tag = 'smem constant byte address 0x4 - core index']
  #allocation1 [shape = 'u32[72,128]{1,0:T(1,128)}', space=vmem, size = 0x9000, scoped, tag = 'internal scratch']
  %s0 = inlined_call_operand.vmem [shape: f32[16,32], index: 0, kind: input, shape index: {}]
  %s1 = inlined_call_operand.hbm [shape: f32[32,64], index: 1, kind: input, shape index: {}]
  %s2 = inlined_call_operand.vmem [shape: f32[1,64], index: 2, kind: input, shape index: {}]
  %s3 = inlined_call_operand.vmem [shape: f32[64,64], index: 3, kind: input, shape index: {}]
  %s4 = inlined_call_operand.vmem [shape: f32[1,64], index: 4, kind: input, shape index: {}]
  %s5 = inlined_call_operand.vmem [shape: f32[64,16], index: 5, kind: input, shape index: {}]
  %s6 = inlined_call_operand.vmem [shape: f32[1,16], index: 6, kind: input, shape index: {}]
  %s7 = inlined_call_operand.hbm [shape: f32[16,16], index: 7, kind: output, shape index: {}]
  %s8 = sld [smem:[#allocation0]]
  $region42: #{actor_forward.1} parent=0
    _
  %s10 = ssub.s32 1, %s8
  %s11 = scalar_select 0, %s10, %s8
  $region1: #{actor_forward.1} parent=0
    #allocation2 [shape = 'u8[16384]{0}', space=vmem, size = 0x4000, scoped, tag = 'input window, operand 1, single buffered']
    #allocation3 [shape = 's32[1]{0}', space=sflag, size = 0x4, scoped, tag = 'scoped memory for actor_forward.1']
    #allocation4 [shape = 's32[1]{0}', space=sflag, size = 0x4, scoped, tag = 'scoped memory for actor_forward.1']
    #allocation5 [shape = 'u8[8192]{0}', space=vmem, size = 0x2000, scoped, tag = 'output window, operand 0, single buffered']
    %12 = vsyncpa [#allocation3], 0
    %13 = vsyncpa [#allocation4], 0
    // Predicated region
    $region2: #{actor_forward.1} parent=1 // pred_check
      _
    $region3: #{actor_forward.1} parent=1 // pred_check_branch
      %15 = sbr.rel (0) target = $region5
    $region4: #{actor_forward.1} parent=1 // pred_region
      _
    $region5: #{actor_forward.1} parent=1 // pred_fallthru
      _
    // Predicated region
    $region6: #{actor_forward.1} parent=1 // pred_check
      _
    $region7: #{actor_forward.1} parent=1 // pred_check_branch
      %17 = sbr.rel (0) target = $region9
    $region8: #{actor_forward.1} parent=1 // pred_region
      %19 = vsyncadd [#allocation3], 0
      %s20 = sshll.u32 %s1, 4
      %s21 = int_to_ptr.hbm [resolvable:$true] %s20
      %s22 = sshll.u32 [#allocation2], 4
      %s23 = int_to_ptr.vmem [resolvable:$true] %s22
      %28 = dma.hbm_to_vmem [thread:$0]  %s21, 512, %s23, [#allocation3], 128, 128, 8
    $region9: #{actor_forward.1} parent=1 // pred_fallthru
      _
    // Predicated region
    $region10: #{actor_forward.1} parent=1 // pred_check
      _
    $region11: #{actor_forward.1} parent=1 // pred_check_branch
      %30 = sbr.rel (0) target = $region13
    $region12: #{actor_forward.1} parent=1 // pred_region
      _
    $region13: #{actor_forward.1} parent=1 // pred_fallthru
      _
    // Predicated region
    $region14: #{actor_forward.1} parent=1 // pred_check
      _
    $region15: #{actor_forward.1} parent=1 // pred_check_branch
      %32 = sbr.rel (0) target = $region17
    $region16: #{actor_forward.1} parent=1 // pred_region
      _
    $region17: #{actor_forward.1} parent=1 // pred_fallthru
      _
    // Predicated region
    $region18: #{actor_forward.1} parent=1 // pred_check
      _
    $region19: #{actor_forward.1} parent=1 // pred_check_branch
      %34 = sbr.rel (0) target = $region21
    $region20: #{actor_forward.1} parent=1 // pred_region
      _
    $region21: #{actor_forward.1} parent=1 // pred_fallthru
      _
    // Predicated region
    $region22: #{actor_forward.1} parent=1 // pred_check
      _
    $region23: #{actor_forward.1} parent=1 // pred_check_branch
      %36 = sbr.rel (0) target = $region25
    $region24: #{actor_forward.1} parent=1 // pred_region
      _
    $region25: #{actor_forward.1} parent=1 // pred_fallthru
      _
    // Predicated region
    $region26: #{actor_forward.1} parent=1 // pred_check
      _
    $region27: #{actor_forward.1} parent=1 // pred_check_branch
      %38 = sbr.rel (0) target = $region29
    $region28: #{actor_forward.1} parent=1 // pred_region
      _
    $region29: #{actor_forward.1} parent=1 // pred_fallthru
      _
    // Predicated region
    $region30: #{actor_forward.1} parent=1 // pred_check
      _
    $region31: #{actor_forward.1} parent=1 // pred_check_branch
      %40 = sbr.rel (0) target = $region33
    $region32: #{actor_forward.1} parent=1 // pred_region
      %42 = dma.done [#allocation3], 512
    $region33: #{actor_forward.1} parent=1 // pred_fallthru
      _
    %v43 = vld [vmem:[%s0] sm:$0xff]
    %v44 = vld [vmem:[%s0 + $0x8] sm:$0xff]
    %v45 = vld [vmem:[#allocation2] sm:$0xff]
    %v46 = vld [vmem:[#allocation2 + $0x8] sm:$0xff]
    %v47 = vld [vmem:[#allocation2 + $0x10] sm:$0xff]
    %v48 = vld [vmem:[#allocation2 + $0x18] sm:$0xff]
    %v49 = vld [vmem:[%s2] sm:$0x1]
    %v51 = vperm.slane %v49, 0
    %vm53 = vcmask 261120
    %v55 = vsel %vm53, %v43, 0
    %v58 = vsel %vm53, %v44, 0
    %60 = vmatpush.msra.mxu0 0.0
    %61 = vmatpush.msra.mxu0 0.0
    %62 = vmatpush.msra.mxu0 0.0
    %63 = vmatpush.msra.mxu0 0.0
    %64 = vmatpush.msra.mxu0 0.0
    %65 = vmatpush.msra.mxu0 0.0
    %66 = vmatpush.msra.mxu0 0.0
    %67 = vmatpush.msra.mxu0 0.0
    %68 = vmatpush.msra.mxu0 0.0
    %69 = vmatpush.msra.mxu0 0.0
    %70 = vmatpush.msra.mxu0 0.0
    %71 = vmatpush.msra.mxu0 0.0
    %72 = vmatpush.msra.mxu0 %v48
    %73 = vmatpush.msra.mxu0 %v47
    %74 = vmatpush.msra.mxu0 %v46
    %75 = vmatpush.msra.mxu0 %v45
    %76 = vmatmul.f32.gmra.mxu0 %v55
    %v77 = vpop.f32.mrf.mxu0
    %v78 = vadd.f32 %v51, %v77
    %79 = vmatmul.f32.gmra.mxu0 %v58
    %v80 = vpop.f32.mrf.mxu0
    %v81 = vadd.f32 %v51, %v80
    %82 = vdwg.mxu0
    %v83 = vtanh.pop %v78
    %v84 = vtanh.pop %v81
    %v85 = vld [vmem:[%s3] sm:$0xff]
    %v86 = vld [vmem:[%s3 + $0x8] sm:$0xff]
    %v87 = vld [vmem:[%s3 + $0x10] sm:$0xff]
    %v88 = vld [vmem:[%s3 + $0x18] sm:$0xff]
    %v89 = vld [vmem:[%s3 + $0x20] sm:$0xff]
    %v90 = vld [vmem:[%s3 + $0x28] sm:$0xff]
    %v91 = vld [vmem:[%s3 + $0x30] sm:$0xff]
    %v92 = vld [vmem:[%s3 + $0x38] sm:$0xff]
    %v93 = vld [vmem:[%s4] sm:$0x1]
    %v95 = vperm.slane %v93, 0
    %vm97 = vcmask 523264
    %v99 = vsel %vm97, %v83, 0
    %v102 = vsel %vm97, %v84, 0
    %104 = vmatpush.msra.mxu0 0.0
    %105 = vmatpush.msra.mxu0 0.0
    %106 = vmatpush.msra.mxu0 0.0
    %107 = vmatpush.msra.mxu0 0.0
    %108 = vmatpush.msra.mxu0 0.0
    %109 = vmatpush.msra.mxu0 0.0
    %110 = vmatpush.msra.mxu0 0.0
    %111 = vmatpush.msra.mxu0 0.0
    %112 = vmatpush.msra.mxu0 %v92
    %113 = vmatpush.msra.mxu0 %v91
    %114 = vmatpush.msra.mxu0 %v90
    %115 = vmatpush.msra.mxu0 %v89
    %116 = vmatpush.msra.mxu0 %v88
    %117 = vmatpush.msra.mxu0 %v87
    %118 = vmatpush.msra.mxu0 %v86
    %119 = vmatpush.msra.mxu0 %v85
    %120 = vmatmul.f32.gmra.mxu0 %v99
    %v121 = vpop.f32.mrf.mxu0
    %v122 = vadd.f32 %v95, %v121
    %123 = vmatmul.f32.gmra.mxu0 %v102
    %v124 = vpop.f32.mrf.mxu0
    %v125 = vadd.f32 %v95, %v124
    %126 = vdwg.mxu0
    %v127 = vtanh.pop %v122
    %v128 = vtanh.pop %v125
    %v129 = vld [vmem:[%s5] sm:$0xff]
    %v130 = vld [vmem:[%s5 + $0x8] sm:$0xff]
    %v131 = vld [vmem:[%s5 + $0x10] sm:$0xff]
    %v132 = vld [vmem:[%s5 + $0x18] sm:$0xff]
    %v133 = vld [vmem:[%s5 + $0x20] sm:$0xff]
    %v134 = vld [vmem:[%s5 + $0x28] sm:$0xff]
    %v135 = vld [vmem:[%s5 + $0x30] sm:$0xff]
    %v136 = vld [vmem:[%s5 + $0x38] sm:$0xff]
    %v137 = vld [vmem:[%s6] sm:$0x1]
    %v139 = vperm.slane %v137, 0
    %v142 = vsel %vm97, %v127, 0
    %v145 = vsel %vm97, %v128, 0
    %147 = vmatpush.msra.mxu0 0.0
    %148 = vmatpush.msra.mxu0 0.0
    %149 = vmatpush.msra.mxu0 0.0
    %150 = vmatpush.msra.mxu0 0.0
    %151 = vmatpush.msra.mxu0 0.0
    %152 = vmatpush.msra.mxu0 0.0
    %153 = vmatpush.msra.mxu0 0.0
    %154 = vmatpush.msra.mxu0 0.0
    %155 = vmatpush.msra.mxu0 %v136
    %156 = vmatpush.msra.mxu0 %v135
    %157 = vmatpush.msra.mxu0 %v134
    %158 = vmatpush.msra.mxu0 %v133
    %159 = vmatpush.msra.mxu0 %v132
    %160 = vmatpush.msra.mxu0 %v131
    %161 = vmatpush.msra.mxu0 %v130
    %162 = vmatpush.msra.mxu0 %v129
    %163 = vmatmul.f32.gmra.mxu0 %v142
    %v164 = vpop.f32.mrf.mxu0
    %v165 = vadd.f32 %v139, %v164
    %166 = vmatmul.f32.gmra.mxu0 %v145
    %v167 = vpop.f32.mrf.mxu0
    %v168 = vadd.f32 %v139, %v167
    %169 = vdwg.mxu0
    %vm170 = vcmask 130048
    %171 = vst.msk [vmem:[#allocation5] sm:$0xff] %vm170, %v165
    %172 = vst.msk [vmem:[#allocation5 + $0x8] sm:$0xff] %vm170, %v168
    // Predicated region
    $region34: #{actor_forward.1} parent=1 // pred_check
      _
    $region35: #{actor_forward.1} parent=1 // pred_check_branch
      %174 = sbr.rel (0) target = $region37
    $region36: #{actor_forward.1} parent=1 // pred_region
      %176 = vsyncadd [#allocation4], 0
      %s177 = sshll.u32 [#allocation5], 4
      %s178 = int_to_ptr.vmem [resolvable:$true] %s177
      %s179 = sshll.u32 %s7, 4
      %s180 = int_to_ptr.hbm [resolvable:$true] %s179
      %185 = dma.vmem_to_hbm [thread:$0]  %s178, 256, %s180, [#allocation4], 128, 128, 8
    $region37: #{actor_forward.1} parent=1 // pred_fallthru
      _
    // Predicated region
    $region38: #{actor_forward.1} parent=1 // pred_check
      _
    $region39: #{actor_forward.1} parent=1 // pred_check_branch
      %187 = sbr.rel (0) target = $region41
    $region40: #{actor_forward.1} parent=1 // pred_region
      %189 = dma.done [#allocation4], 256
    $region41: #{actor_forward.1} parent=1 // pred_fallthru
      _
    %190 = vsyncpa [#allocation3], 1
    %191 = vsyncpa [#allocation4], 1

</llo_original>
